<compile_context>
chip_gen: v6e
topology: v6e:2x2x1
jax: 0.10.0
libtpu: 0.0.40
codegen_flags: <defaults>
</compile_context>

<pallas_src>
import math

import jax
import jax.numpy as jnp
from jax.experimental import pallas as pl
from jax.experimental.pallas import tpu as pltpu

_HALF_PI = 0.5 * math.pi


def _round_up(v, m):
    return (v + m - 1) // m * m


def _pick_tile(total, desired, base):
    """Largest multiple of `base` that divides `total` and is <= desired."""
    desired = max(base, min(desired, total))
    t = (desired // base) * base
    while total % t:
        t -= base
    return t


# --------------------------------- kernel -----------------------------------
def _sqs_kernel(x_ref, th_ref, u_ref, spike_ref, pspike_ref):
    """One (tb, tn) tile of (batch, neuron) elements.

    x_ref  : (tb, tn) raw input x
    th_ref : (1, tn)  (theta_mem + theta_in)/2 per neuron (broadcast over batch)
    u_ref  : (tb, tn) U[0,1) uniforms for the Bernoulli sample
    """
    x = x_ref[...]
    ht = th_ref[...]                       # (1, tn) -> sublane-broadcast
    u = u_ref[...]

    # 'custom' encoding: angle = x*pi if x > 0 else 0; half angle used below.
    a = jnp.where(x > 0.0, x, 0.0) * jnp.float32(_HALF_PI)
    phi = a + ht                           # same-axis RX half-angles add

    c = jnp.cos(phi)
    prob_0 = c * c
    p_spike = jnp.clip(1.0 - prob_0, 0.0, 1.0)

    spike = (u < p_spike).astype(jnp.float32)

    spike_ref[...] = spike
    pspike_ref[...] = p_spike


# -------------------------------- wrapper ------------------------------------
def quantum_spiking_layer(x, theta_mem, theta_in, theta_ent, key, *,
                          batch_block=512, neuron_block=512, return_state=True):
    """Forward pass of QuantumSpikingLayer from a reset internal state.

    Returns (spike, p_spike) of shape (B, num_neurons) and, if return_state,
    the new per-neuron 4x4 complex density matrices (B*num_neurons, 4, 4),
    i.e. the value the torch module stores in self.full_state.
    """
    num_neurons = theta_mem.shape[0]
    B = x.shape[0]
    x2 = x.reshape(B, num_neurons).astype(jnp.float32)

    # theta_ent parameterises a CRX controlled on the memory qubit, which is |0>
    # in the reset state, so it cannot affect this forward pass (see header).
    del theta_ent

    # Per-neuron combined half-angle (N elements only, never broadcast in HBM).
    half_theta = 0.5 * (theta_mem.astype(jnp.float32) + theta_in.astype(jnp.float32))

    B8 = _round_up(B, 8)
    N128 = _round_up(num_neurons, 128)

    tb = _pick_tile(B8, batch_block, 8)
    tn = _pick_tile(N128, neuron_block, 128)
    # v7x: try to give the parallel grid >= 2 steps so both TensorCores work.
    if (B8 // tb) * (N128 // tn) == 1:
        if B8 >= 16:
            tb = _pick_tile(B8, max(8, B8 // 2), 8)
        elif N128 >= 256:
            tn = _pick_tile(N128, max(128, N128 // 2), 128)

    # x padded once; theta padded at N size (tiny); uniforms generated directly
    # in the padded/tiled shape (no extra pad pass over M elements).
    x_p = jnp.pad(x2, ((0, B8 - B), (0, N128 - num_neurons)))
    th_p = jnp.pad(half_theta, (0, N128 - num_neurons)).reshape(1, N128)
    u_p = jax.random.uniform(key, (B8, N128), dtype=jnp.float32)

    grid = (B8 // tb, N128 // tn)
    vec_spec = pl.BlockSpec((tb, tn), lambda i, j: (i, j))
    th_spec = pl.BlockSpec((1, tn), lambda i, j: (0, j))   # ignores batch axis

    spike_p, pspike_p = pl.pallas_call(
        _sqs_kernel,
        out_shape=(
            jax.ShapeDtypeStruct((B8, N128), jnp.float32),   # spike (meas)
            jax.ShapeDtypeStruct((B8, N128), jnp.float32),   # p_spike
        ),
        grid=grid,
        in_specs=[vec_spec, th_spec, vec_spec],
        out_specs=(vec_spec, vec_spec),
        compiler_params=pltpu.CompilerParams(
            dimension_semantics=("parallel", "parallel")),
    )(x_p, th_p, u_p)

    spike = spike_p[:B, :num_neurons]
    p_spike = pspike_p[:B, :num_neurons]

    if not return_state:
        return spike, p_spike

    # new full_state = rho_mem (x) |0><0| with rho_mem = diag(1-meas, meas)
    # exactly (pure projective measurement of a pure state) -> rebuild it from
    # the spike output; no density-matrix traffic through the kernel.
    M = B * num_neurons
    sf = spike.reshape(M).astype(jnp.complex64)
    new_state = (jnp.zeros((M, 4, 4), jnp.complex64)
                 .at[:, 0, 0].set(1.0 - sf)
                 .at[:, 2, 2].set(sf))
    return spike, p_spike, new_state


# ------------------------ independent reference (check) ----------------------
def _p_spike_reference(x, theta_mem, theta_in, theta_ent):
    """Pure-JAX mirror of the torch density-matrix forward (p_spike only)."""
    B = x.shape[0]
    N = theta_mem.shape[0]
    M = B * N
    xf = x.reshape(M).astype(jnp.float32)
    tm = jnp.tile(theta_mem.astype(jnp.float32), B)
    ti = jnp.tile(theta_in.astype(jnp.float32), B)
    te = jnp.tile(theta_ent.astype(jnp.float32), B)

    def rx(theta):
        c = jnp.cos(0.5 * theta).astype(jnp.complex64)
        s = jnp.sin(0.5 * theta).astype(jnp.complex64)
        mis = (-1j) * s
        return jnp.stack([jnp.stack([c, mis], -1), jnp.stack([mis, c], -1)], -2)

    def block_diag(A, Bm):
        Z = jnp.zeros_like(A)
        top = jnp.concatenate([A, Z], axis=-1)
        bot = jnp.concatenate([Z, Bm], axis=-1)
        return jnp.concatenate([top, bot], axis=-2)

    def conj_apply(rho, G):
        return jnp.einsum("mij,mjk,mlk->mil", G, rho, jnp.conj(G))

    angles = jnp.where(xf > 0.0, xf * jnp.float32(math.pi), jnp.float32(0.0))
    rho = jnp.zeros((M, 4, 4), jnp.complex64).at[:, 0, 0].set(1.0)
    RXen = rx(angles)
    rho = conj_apply(rho, block_diag(RXen, RXen))           # encoding (wires [1])
    I2 = jnp.broadcast_to(jnp.eye(2, dtype=jnp.complex64), (M, 2, 2))
    rho = conj_apply(rho, block_diag(I2, rx(te)))           # CRX(theta_ent)
    RXm = rx(tm)
    rho = conj_apply(rho, block_diag(RXm, RXm))             # RX(theta_mem)
    RXi = rx(ti)
    rho = conj_apply(rho, block_diag(RXi, RXi))             # RX(theta_in)
    prob_0 = jnp.real(rho[:, 0, 0] + rho[:, 2, 2])
    return jnp.clip(1.0 - prob_0, 0.0, 1.0).reshape(B, N)


if __name__ == "__main__":
    root = jax.random.PRNGKey(0)
    k1, k2, k3, k4, k5 = jax.random.split(root, 5)

    B, num_neurons = 2, 32
    x = jax.random.normal(k1, (B, num_neurons), dtype=jnp.float32)
    theta_mem = jax.random.normal(k2, (num_neurons,), dtype=jnp.float32) * 0.1
    theta_in = jax.random.normal(k3, (num_neurons,), dtype=jnp.float32) * 0.1
    theta_ent = jax.random.normal(k4, (num_neurons,), dtype=jnp.float32) * 0.1

    spike, p_spike, new_state = quantum_spiking_layer(
        x, theta_mem, theta_in, theta_ent, key=k5)
    jax.block_until_ready((spike, p_spike, new_state))

    assert spike.shape == x.shape and p_spike.shape == x.shape
    assert new_state.shape == (B * num_neurons, 4, 4)
    assert bool(jnp.all((p_spike >= 0.0) & (p_spike <= 1.0)))
    assert bool(jnp.all((spike == 0.0) | (spike == 1.0)))

    # p_spike against an independent density-matrix reference.
    p_ref = _p_spike_reference(x, theta_mem, theta_in, theta_ent)
    assert bool(jnp.allclose(p_spike, p_ref, atol=1e-4, rtol=1e-4))

    # new_state structure: rho_mem (x) |0><0| with rho_mem = diag(1-spike, spike).
    M = B * num_neurons
    sf = spike.reshape(M).astype(jnp.complex64)
    expected = (jnp.zeros((M, 4, 4), jnp.complex64)
                .at[:, 0, 0].set(1.0 - sf)
                .at[:, 2, 2].set(sf))
    assert bool(jnp.allclose(new_state, expected))

    print("KERNEL_OK")
</pallas_src>

<mosaic_0001>
module attributes {stable_mosaic.version = 11 : i64} {
  func.func @_sqs_kernel(%arg0: i32, %arg1: i32, %arg2: memref<8x128xf32, #tpu.memory_space<vmem>>, %arg3: memref<1x128xf32, #tpu.memory_space<vmem>>, %arg4: memref<8x128xf32, #tpu.memory_space<vmem>>, %arg5: memref<8x128xf32, #tpu.memory_space<vmem>>, %arg6: memref<8x128xf32, #tpu.memory_space<vmem>>) attributes {dimension_semantics = [#tpu.dimension_semantics<parallel>, #tpu.dimension_semantics<parallel>], iteration_bounds = array<i64: 1, 1>, scalar_prefetch = 0 : i64, scratch_operands = 0 : i64, tpu.core_type = #tpu.core_type<tc>, window_params = [{transform_indices = @transform_0, window_bounds = array<i64: 8, 128>}, {transform_indices = @transform_1, window_bounds = array<i64: 1, 128>}, {transform_indices = @transform_2, window_bounds = array<i64: 8, 128>}, {transform_indices = @transform_3, window_bounds = array<i64: 8, 128>}, {transform_indices = @transform_4, window_bounds = array<i64: 8, 128>}]} {
    %c0 = arith.constant 0 : index
    %c0_0 = arith.constant 0 : index
    %0 = vector.load %arg2[%c0, %c0_0] : memref<8x128xf32, #tpu.memory_space<vmem>>, vector<8x128xf32>
    %c0_1 = arith.constant 0 : index
    %c0_2 = arith.constant 0 : index
    %1 = vector.load %arg3[%c0_1, %c0_2] : memref<1x128xf32, #tpu.memory_space<vmem>>, vector<1x128xf32>
    %c0_3 = arith.constant 0 : index
    %c0_4 = arith.constant 0 : index
    %2 = vector.load %arg4[%c0_3, %c0_4] : memref<8x128xf32, #tpu.memory_space<vmem>>, vector<8x128xf32>
    %cst = arith.constant 0.000000e+00 : f32
    %3 = vector.broadcast %cst : f32 to vector<8x128xf32>
    %4 = arith.cmpf ogt, %0, %3 : vector<8x128xf32>
    %cst_5 = arith.constant 0.000000e+00 : f32
    %5 = vector.broadcast %cst_5 : f32 to vector<8x128xf32>
    %6 = arith.select %4, %0, %5 : vector<8x128xi1>, vector<8x128xf32>
    %cst_6 = arith.constant 1.57079637 : f32
    %7 = vector.broadcast %cst_6 : f32 to vector<8x128xf32>
    %8 = arith.mulf %6, %7 : vector<8x128xf32>
    %9 = vector.broadcast %1 : vector<1x128xf32> to vector<8x128xf32>
    %10 = arith.addf %8, %9 : vector<8x128xf32>
    %11 = math.cos %10 : vector<8x128xf32>
    %12 = arith.mulf %11, %11 : vector<8x128xf32>
    %cst_7 = arith.constant 1.000000e+00 : f32
    %13 = vector.broadcast %cst_7 : f32 to vector<8x128xf32>
    %14 = arith.subf %13, %12 : vector<8x128xf32>
    %cst_8 = arith.constant 0.000000e+00 : f32
    %cst_9 = arith.constant 1.000000e+00 : f32
    %15 = vector.broadcast %cst_8 : f32 to vector<8x128xf32>
    %16 = arith.maximumf %15, %14 : vector<8x128xf32>
    %17 = vector.broadcast %cst_9 : f32 to vector<8x128xf32>
    %18 = arith.minimumf %17, %16 : vector<8x128xf32>
    %19 = arith.cmpf olt, %2, %18 : vector<8x128xf32>
    %20 = arith.extui %19 : vector<8x128xi1> to vector<8x128xi32>
    %21 = arith.sitofp %20 : vector<8x128xi32> to vector<8x128xf32>
    %c0_10 = arith.constant 0 : index
    %c0_11 = arith.constant 0 : index
    %22 = vector.load %arg5[%c0_10, %c0_11] : memref<8x128xf32, #tpu.memory_space<vmem>>, vector<8x128xf32>
    tpu.vector_store %arg5[%c0_10, %c0_11], %21 {strides = array<i32>} : memref<8x128xf32, #tpu.memory_space<vmem>>, vector<8x128xf32>,
    %c0_12 = arith.constant 0 : index
    %c0_13 = arith.constant 0 : index
    %23 = vector.load %arg6[%c0_12, %c0_13] : memref<8x128xf32, #tpu.memory_space<vmem>>, vector<8x128xf32>
    tpu.vector_store %arg6[%c0_12, %c0_13], %18 {strides = array<i32>} : memref<8x128xf32, #tpu.memory_space<vmem>>, vector<8x128xf32>,
    return
  }
  func.func @transform_0(%arg0: i32, %arg1: i32) -> (i32, i32) {
    %c0_i32 = arith.constant 0 : i32
    return %arg0, %arg1 : i32, i32
  }
  func.func @transform_1(%arg0: i32, %arg1: i32) -> (i32, i32) {
    %c0_i32 = arith.constant 0 : i32
    %c0_i32_0 = arith.constant 0 : i32
    return %c0_i32, %arg1 : i32, i32
  }
  func.func @transform_2(%arg0: i32, %arg1: i32) -> (i32, i32) {
    %c0_i32 = arith.constant 0 : i32
    return %arg0, %arg1 : i32, i32
  }
  func.func @transform_3(%arg0: i32, %arg1: i32) -> (i32, i32) {
    %c0_i32 = arith.constant 0 : i32
    return %arg0, %arg1 : i32, i32
  }
  func.func @transform_4(%arg0: i32, %arg1: i32) -> (i32, i32) {
    %c0_i32 = arith.constant 0 : i32
    return %arg0, %arg1 : i32, i32
  }
}

</mosaic_0001>

<llo_original>
// kernel: tpu_custom_call.1
$region0: #{tpu_custom_call.1}
  #allocation0 [shape = 'u32[]', space=smem, size = 0x4, offset = 0x4, fixed_abs, tag = 'smem constant byte address 0x4 - core index']
  #allocation1 [shape = 'u32[144,128]{1,0:T(1,128)}', space=vmem, size = 0x12000, scoped, tag = 'internal scratch']
  %s0 = inlined_call_operand.hbm [shape: f32[8,128], index: 0, kind: input, shape index: {}]
  %s1 = inlined_call_operand.vmem [shape: f32[1,128], index: 1, kind: input, shape index: {}]
  %s2 = inlined_call_operand.hbm [shape: f32[8,128], index: 2, kind: input, shape index: {}]
  %s3 = inlined_call_operand.hbm [shape: f32[8,128], index: 3, kind: output, shape index: {0}]
  %s4 = inlined_call_operand.hbm [shape: f32[8,128], index: 4, kind: output, shape index: {1}]
  %5 = xla_tuple %s3, %s4
  %s6 = sld [smem:[#allocation0]]
  $region38: #{tpu_custom_call.1} parent=0
    _
  %s8 = ssub.s32 1, %s6
  %s9 = scalar_select 0, %s8, %s6
  $region1: #{tpu_custom_call.1} parent=0
    #allocation2 [shape = 'u8[4096]{0}', space=vmem, size = 0x1000, scoped, tag = 'input window, operand 0, single buffered']
    #allocation3 [shape = 's32[1]{0}', space=sflag, size = 0x4, scoped, tag = 'scoped memory for tpu_custom_call.1']
    #allocation4 [shape = 's32[1]{0}', space=sflag, size = 0x4, scoped, tag = 'scoped memory for tpu_custom_call.1']
    #allocation5 [shape = 'u8[4096]{0}', space=vmem, size = 0x1000, scoped, tag = 'input window, operand 2, single buffered']
    #allocation6 [shape = 's32[1]{0}', space=sflag, size = 0x4, scoped, tag = 'scoped memory for tpu_custom_call.1']
    #allocation7 [shape = 'u8[4096]{0}', space=vmem, size = 0x1000, scoped, tag = 'output window, operand 0, single buffered']
    #allocation8 [shape = 'u8[4096]{0}', space=vmem, size = 0x1000, scoped, tag = 'output window, operand 1, single buffered']
    #allocation9 [shape = 's32[1]{0}', space=sflag, size = 0x4, scoped, tag = 'scoped memory for tpu_custom_call.1']
    %10 = vsyncpa [#allocation3], 0
    %11 = vsyncpa [#allocation6], 0
    %12 = vsyncpa [#allocation4], 0
    %13 = vsyncpa [#allocation9], 0
    // Predicated region
    $region2: #{tpu_custom_call.1} parent=1 // pred_check
      _
    $region3: #{tpu_custom_call.1} parent=1 // pred_check_branch
      %15 = sbr.rel (0) target = $region5
    $region4: #{tpu_custom_call.1} parent=1 // pred_region
      %s17 = ssub.s32 128, 128
      %18 = vsyncadd [#allocation3], %s17
      %s20 = sshll.u32 [#allocation2], 4
      %s21 = int_to_ptr.vmem [resolvable:$true] %s20
      %23 = dma.hbm_to_vmem [thread:$0]  %s0, 128, %s21, [#allocation3]
    $region5: #{tpu_custom_call.1} parent=1 // pred_fallthru
      _
    // Predicated region
    $region6: #{tpu_custom_call.1} parent=1 // pred_check
      _
    $region7: #{tpu_custom_call.1} parent=1 // pred_check_branch
      %25 = sbr.rel (0) target = $region9
    $region8: #{tpu_custom_call.1} parent=1 // pred_region
      _
    $region9: #{tpu_custom_call.1} parent=1 // pred_fallthru
      _
    // Predicated region
    $region10: #{tpu_custom_call.1} parent=1 // pred_check
      _
    $region11: #{tpu_custom_call.1} parent=1 // pred_check_branch
      %27 = sbr.rel (0) target = $region13
    $region12: #{tpu_custom_call.1} parent=1 // pred_region
      %s29 = ssub.s32 128, 128
      %30 = vsyncadd [#allocation6], %s29
      %s32 = sshll.u32 [#allocation5], 4
      %s33 = int_to_ptr.vmem [resolvable:$true] %s32
      %35 = dma.hbm_to_vmem [thread:$0]  %s2, 128, %s33, [#allocation6]
    $region13: #{tpu_custom_call.1} parent=1 // pred_fallthru
      _
    // Predicated region
    $region14: #{tpu_custom_call.1} parent=1 // pred_check
      _
    $region15: #{tpu_custom_call.1} parent=1 // pred_check_branch
      %37 = sbr.rel (0) target = $region17
    $region16: #{tpu_custom_call.1} parent=1 // pred_region
      %38 = dma.done [#allocation3], 128
    $region17: #{tpu_custom_call.1} parent=1 // pred_fallthru
      _
    // Predicated region
    $region18: #{tpu_custom_call.1} parent=1 // pred_check
      _
    $region19: #{tpu_custom_call.1} parent=1 // pred_check_branch
      %40 = sbr.rel (0) target = $region21
    $region20: #{tpu_custom_call.1} parent=1 // pred_region
      %41 = dma.done [#allocation6], 128
    $region21: #{tpu_custom_call.1} parent=1 // pred_fallthru
      _
    %v42 = vld [vmem:[#allocation2] sm:$0xff]
    %v43 = vld [vmem:[%s1] sm:$0x1]
    %v44 = vld [vmem:[#allocation5] sm:$0xff]
    %vm45 = vcmp.gt.f32.partialorder %v42, 0.0
    %v46 = vsel %vm45, %v42, 0.0
    %v47 = vmul.f32 %v46, 1.5707964
    %v49 = vlaneseq
    %v50 = vshrl.u32 %v49, 7
    %v51 = vsub.s32 0, %v50
    %v52 = vrot.slane %v43, %v51
    %v54 = vadd.f32 %v47, %v52
    %v55 = vand.u32 2147483647, %v54
    %vm56 = vcmp.le.f32.partialorder %v55, 0.7853982
    %vm57 = vcmp.lt.s32.totalorder %v54, 0
    %v58 = vand.u32 %v54, 2139095040
    %v59 = vshrl.u32 %v58, 23
    %v60 = vsub.s32 %v59, 127
    %v61 = vand.u32 2147483647, %v54
    %v62 = vand.u32 %v61, 8388607
    %v63 = vor.u32 %v62, 8388608
    %v64 = vsub.s32 0, %v63
    %v65 = vadd.s32 %v60, 1
    %vm66 = vcmp.gt.s32.totalorder %v65, 0
    %v67 = vsel %vm66, %v65, 0
    %v68 = vshrl.u32 %v67, 5
    %v69 = vand.u32 %v67, 31
    %v70 = vsub.s32 32, %v69
    %v71 = vshrl.u32 683565275, %v70
    %v72 = vshll.u32 683565275, %v69
    %v73 = vshrl.u32 2475754826, %v70
    %v74 = vor.u32 %v72, %v73
    %v75 = vshll.u32 2475754826, %v69
    %v76 = vshrl.u32 2131351028, %v70
    %v77 = vor.u32 %v75, %v76
    %v78 = vshll.u32 2131351028, %v69
    %v79 = vshrl.u32 2102212464, %v70
    %v80 = vor.u32 %v78, %v79
    %v81 = vshll.u32 2102212464, %v69
    %v82 = vshrl.u32 920167782, %v70
    %v83 = vor.u32 %v81, %v82
    %v84 = vshll.u32 920167782, %v69
    %v85 = vshrl.u32 1326507024, %v70
    %v86 = vor.u32 %v84, %v85
    %vm87 = vcmp.lt.s32.totalorder %v68, 1
    %vm88 = vcmp.lt.s32.totalorder %v68, 2
    %vm89 = vcmp.lt.s32.totalorder %v68, 3
    %vm90 = vcmp.lt.s32.totalorder %v68, 4
    %v91 = vsel %vm87, %v71, %v74
    %v92 = vsel %vm90, %v80, 2102212464
    %v93 = vsel %vm89, %v77, %v92
    %v94 = vsel %vm88, %v91, %v93
    %v95 = vsel %vm87, %v74, %v77
    %v96 = vsel %vm90, %v83, 920167782
    %v97 = vsel %vm89, %v80, %v96
    %v98 = vsel %vm88, %v95, %v97
    %v99 = vsel %vm87, %v77, %v80
    %v100 = vsel %vm90, %v86, 1326507024
    %v101 = vsel %vm89, %v83, %v100
    %v102 = vsel %vm88, %v99, %v101
    %v103 = vshll.u32 %v63, 8
    %v104 = vmul.u32.u64.compose %v103, %v102
    %v105 = vextract.low.u32 %v104
    %v106 = vextract.high.u32 %v104
    %v107 = vmul.u32.u64.compose %v103, %v98
    %v108 = vextract.low.u32 %v107
    %v109 = vextract.high.u32 %v107
    %v110 = vmul.u32 %v103, %v94
    %v111 = vadd.s32 %v106, %v108
    %vm112 = vc.u32 %v106, %v108
    %v113 = vadd.s32 %v109, 1
    %v114 = vsel %vm112, %v113, %v109
    %v115 = vadd.s32 %v110, %v114
    %v116 = vadd.s32 %v115, 536870912
    %v117 = vshrl.u32 %v116, 30
    %v118 = vshll.u32 %v117, 30
    %v119 = vsub.s32 %v115, %v118
    %vm120 = vcmp.lt.s32.totalorder %v119, 0
    %v121 = vsub.s32 0, %v119
    %v122 = vsel %vm120, %v121, %v119
    %v123 = vclz %v122
    %v124 = vsub.s32 %v123, 2
    %vm125 = vcmp.gt.s32.totalorder 0, %v124
    %v126 = vsel %vm125, 0, %v124
    %v127 = vsub.s32 32, %v126
    %v128 = vshll.u32 %v119, %v126
    %v129 = vshrl.u32 %v111, %v127
    %v130 = vor.u32 %v128, %v129
    %v131 = vsub.s32 4294967266, %v126
    %v132 = vadd.s32 %v131, 127
    %v133 = vshll.u32 %v132, 23
    %v134 = vor.u32 4788187, %v133
    %v135 = vand.u32 2147483647, %v134
    %v137 = vcvt.s32.f32 %v130
    %v138 = vmul.f32 %v137, %v135
    %v139 = vxor.u32 %v138, 2147483648
    %v140 = vsel %vm57, %v139, %v138
    %v141 = vsub.s32 4, %v117
    %v142 = vsel %vm57, %v141, %v117
    %v143 = vsel %vm56, %v54, %v140
    %v144 = vsel %vm56, 0, %v142
    %v145 = vcosq.f32.pop %v143
    %v146 = vsinq.f32.pop %v143
    %vm147 = vweird.f32 %v54
    %v148 = vand.u32 %v144, 3
    %vm149 = vcmp.lt.s32.totalorder %v148, 2
    %vm150 = vcmp.eq.s32.totalorder %v148, 0
    %v151 = vxor.u32 %v146, 2147483648
    %v152 = vsel %vm150, %v145, %v151
    %vm153 = vcmp.eq.s32.totalorder %v148, 2
    %v154 = vxor.u32 %v145, 2147483648
    %v155 = vsel %vm153, %v154, %v146
    %v156 = vsel %vm149, %v152, %v155
    %v157 = vsel %vm147, nan, %v156
    %v158 = vmul.f32 %v157, %v157
    %v159 = vsub.f32 1.0, %v158
    %v160 = vmax.f32 %v159, 0.0
    %v161 = vmin.f32 %v160, 1.0
    %vm162 = vcmp.lt.f32.partialorder %v44, %v161
    %v163 = vsel %vm162, 1, 0
    %v164 = vcvt.s32.f32 %v163
    %165 = vst [vmem:[#allocation7] sm:$0xff] %v164
    %166 = vst [vmem:[#allocation8] sm:$0xff] %v161
    // Predicated region
    $region22: #{tpu_custom_call.1} parent=1 // pred_check
      _
    $region23: #{tpu_custom_call.1} parent=1 // pred_check_branch
      %168 = sbr.rel (0) target = $region25
    $region24: #{tpu_custom_call.1} parent=1 // pred_region
      %s170 = ssub.s32 128, 128
      %171 = vsyncadd [#allocation4], %s170
      %s173 = sshll.u32 [#allocation7], 4
      %s174 = int_to_ptr.vmem [resolvable:$true] %s173
      %176 = dma.vmem_to_hbm [thread:$0]  %s174, 128, %s3, [#allocation4]
    $region25: #{tpu_custom_call.1} parent=1 // pred_fallthru
      _
    // Predicated region
    $region26: #{tpu_custom_call.1} parent=1 // pred_check
      _
    $region27: #{tpu_custom_call.1} parent=1 // pred_check_branch
      %178 = sbr.rel (0) target = $region29
    $region28: #{tpu_custom_call.1} parent=1 // pred_region
      %s180 = ssub.s32 128, 128
      %181 = vsyncadd [#allocation9], %s180
      %s183 = sshll.u32 [#allocation8], 4
      %s184 = int_to_ptr.vmem [resolvable:$true] %s183
      %186 = dma.vmem_to_hbm [thread:$0]  %s184, 128, %s4, [#allocation9]
    $region29: #{tpu_custom_call.1} parent=1 // pred_fallthru
      _
    // Predicated region
    $region30: #{tpu_custom_call.1} parent=1 // pred_check
      _
    $region31: #{tpu_custom_call.1} parent=1 // pred_check_branch
      %188 = sbr.rel (0) target = $region33
    $region32: #{tpu_custom_call.1} parent=1 // pred_region
      %189 = dma.done [#allocation4], 128
    $region33: #{tpu_custom_call.1} parent=1 // pred_fallthru
      _
    // Predicated region
    $region34: #{tpu_custom_call.1} parent=1 // pred_check
      _
    $region35: #{tpu_custom_call.1} parent=1 // pred_check_branch
      %191 = sbr.rel (0) target = $region37
    $region36: #{tpu_custom_call.1} parent=1 // pred_region
      %192 = dma.done [#allocation9], 128
    $region37: #{tpu_custom_call.1} parent=1 // pred_fallthru
      _
    %193 = vsyncpa [#allocation3], 1
    %194 = vsyncpa [#allocation6], 1
    %195 = vsyncpa [#allocation4], 1
    %196 = vsyncpa [#allocation9], 1

</llo_original>
